<compile_context>
chip_gen: v6e
topology: v6e:2x2x1
jax: 0.10.0
libtpu: 0.0.40
codegen_flags: <defaults>
</compile_context>

<pallas_src>
import functools
from math import sqrt

import jax
import jax.numpy as jnp
import numpy as np
from jax.experimental import pallas as pl
from jax.experimental.pallas import tpu as pltpu

_LANES = 128
_SUBLANES = 8
# ~2 MiB per x tile: with double-buffered in + out tiles this stays far below the
# scoped-VMEM default on v5e (16 MiB), v6e (32 MiB) and v7x (32 MiB of 64 MiB).
_TARGET_TILE_BYTES = 2 << 20


def _advdrop_kernel(seed_ref, thr_ref, x_ref, o_ref, *, tile_rows, keep_mag):
    """One row tile: counter-hash PRNG -> uint32 threshold compare -> masked scale."""
    i = pl.program_id(0)
    x = x_ref[...]                                    # (TR, C), native dtype (no f32 upcast)
    R, C = x_ref.shape

    # Counter-based PRNG: mix (global_row, col, seed) with a lowbias32-style hash.
    # Pure VPU integer ops (works under Mosaic and interpret mode), deterministic
    # per element, distinct across grid steps -> safe with a "parallel" row axis.
    row = jax.lax.broadcasted_iota(jnp.int32, (R, C), 0) + i * tile_rows
    col = jax.lax.broadcasted_iota(jnp.int32, (R, C), 1)
    seed = seed_ref[0].astype(jnp.uint32)
    h = row.astype(jnp.uint32) * jnp.uint32(0x9E3779B1)
    h = h ^ (col.astype(jnp.uint32) * jnp.uint32(0x85EBCA77))
    h = h + seed * jnp.uint32(0xC2B2AE3D)
    h = h ^ (h >> 16)
    h = h * jnp.uint32(0x7FEB352D)
    h = h ^ (h >> 15)
    h = h * jnp.uint32(0x846CA68B)
    h = h ^ (h >> 16)

    drop = h < thr_ref[...]                           # (1, C) thresholds broadcast over rows
    keep = jnp.asarray(keep_mag, dtype=x.dtype)
    o_ref[...] = jnp.where(drop, jnp.zeros_like(x), x * keep)


def _pick_tile_rows(rows, row_bytes):
    if rows * row_bytes <= _TARGET_TILE_BYTES:
        return rows                                   # single tile, full (valid: equals full dim)
    tr = max(_SUBLANES, (_TARGET_TILE_BYTES // row_bytes) // _SUBLANES * _SUBLANES)
    return min(tr, rows)


def adv_dropout(x, weight, seed, *, p, k=sqrt(2.0), eps=1e-6, training=True):
    """AdvDropout forward.  x: (B, S, H), weight: (H,), seed: python int."""
    if not training:
        return x
    B, S, H = x.shape
    rows = B * S
    keep_mag = 1.0 / (1.0 - p)

    # ---- per-feature drop prob -> uint32 threshold, hoisted out of the kernel ----
    w = weight.astype(jnp.float32)
    mean = jnp.mean(w)
    std = jnp.sqrt(jnp.sum((w - mean) ** 2) / jnp.float32(max(H - 1, 1)))  # torch.std: ddof=1
    dp = jax.nn.sigmoid((w - mean) / (std + eps) * k)
    dp = dp * (p / jnp.mean(dp))                      # rescale so mean(dp) == p
    dp = jnp.clip(dp, 0.0, 1.0)                       # rescale can push dp past 1
    # P(bits < thr) ~= dp ; clamp below 2^32 so the f32->u32 cast never wraps.
    thr = jnp.minimum(dp * 4294967296.0, 4294967040.0).astype(jnp.uint32)

    # ---- fold rows into lanes when H < 128 so output stores are lane-dense ----
    fold = 1
    if H < _LANES and _LANES % H == 0 and rows % (_LANES // H) == 0:
        fold = _LANES // H
    rows2, H2 = rows // fold, H * fold
    x2 = x.reshape(rows2, H2)
    thr2 = jnp.tile(thr, fold).reshape(1, H2)         # threshold repeats per folded row group

    tr = _pick_tile_rows(rows2, H2 * x.dtype.itemsize)
    grid = (pl.cdiv(rows2, tr),)

    kernel = functools.partial(_advdrop_kernel, tile_rows=tr, keep_mag=float(keep_mag))

    out = pl.pallas_call(
        kernel,
        out_shape=jax.ShapeDtypeStruct((rows2, H2), x.dtype),
        grid_spec=pltpu.PrefetchScalarGridSpec(
            num_scalar_prefetch=1,                             # seed -> SMEM
            grid=grid,
            in_specs=[
                pl.BlockSpec((1, H2), lambda i, s: (0, 0)),    # thresholds: loaded once, resident
                pl.BlockSpec((tr, H2), lambda i, s: (i, 0)),   # x: streamed row tiles
            ],
            out_specs=pl.BlockSpec((tr, H2), lambda i, s: (i, 0)),
        ),
        compiler_params=pltpu.CompilerParams(
            # Row tiles are fully independent (hash PRNG, not stateful) -> parallel
            # lets v7x shard the grid across its 2 TensorCores; no-op on v5e/v6e.
            dimension_semantics=("parallel",),
        ),
    )(jnp.asarray([seed], dtype=jnp.int32), thr2, x2)

    return out.reshape(B, S, H)


if __name__ == "__main__":
    # Small shapes implied by the module: batch=2, seq=8, hidden(isize)=32, dim=-1.
    B, S, H = 2, 8, 32
    p = 0.1

    key = jax.random.PRNGKey(0)
    kx, kw = jax.random.split(key)
    x = jax.random.normal(kx, (B, S, H), dtype=jnp.float32)
    # nn.Parameter(torch.zeros(isize)) in __init__; use a small deterministic
    # non-zero init so the normalize/sigmoid path is actually exercised.
    weight = 0.02 * jax.random.normal(kw, (H,), dtype=jnp.float32)

    out = adv_dropout(x, weight, seed=1234, p=p, training=True)
    out = jax.block_until_ready(out)

    # Sanity: every element is either 0 (dropped) or x / (1 - p) (kept).
    xn, on = np.asarray(x), np.asarray(out)
    kept = on != 0.0
    assert np.allclose(on[kept], xn[kept] / (1.0 - p), rtol=1e-5, atol=1e-6)
    n_drop = on.size - int(kept.sum())
    assert 0 < n_drop < on.size
    assert on.shape == xn.shape and on.dtype == xn.dtype

    # TODO(synk): backward / adversarial maskp gradient path (DropFunction.backward)
    # is not implemented; this kernel covers the forward pass only.
    print("KERNEL_OK")
</pallas_src>

<mosaic_0001>
module attributes {stable_mosaic.version = 11 : i64} {
  func.func @_advdrop_kernel(%arg0: i32, %arg1: memref<1xi32, #tpu.memory_space<smem>>, %arg2: memref<1x128xi32, #tpu.memory_space<vmem>>, %arg3: memref<4x128xf32, #tpu.memory_space<vmem>>, %arg4: memref<4x128xf32, #tpu.memory_space<vmem>>) attributes {dimension_semantics = [#tpu.dimension_semantics<parallel>], iteration_bounds = array<i64: 1>, scalar_prefetch = 1 : i64, scratch_operands = 0 : i64, tpu.core_type = #tpu.core_type<tc>, window_params = [{pipeline_mode = #tpu.pipeline_mode<synchronous>, transform_indices = @transform_0, window_bounds = array<i64: 1, 128>}, {transform_indices = @transform_1, window_bounds = array<i64: 4, 128>}, {transform_indices = @transform_2, window_bounds = array<i64: 4, 128>}]} {
    %c0 = arith.constant 0 : index
    %c0_0 = arith.constant 0 : index
    %0 = vector.load %arg3[%c0, %c0_0] : memref<4x128xf32, #tpu.memory_space<vmem>>, vector<4x128xf32>
    %1 = tpu.iota {dimensions = array<i32: 0>} : vector<4x128xi32>
    %c4_i32 = arith.constant 4 : i32
    %2 = arith.muli %arg0, %c4_i32 : i32
    %3 = vector.broadcast %2 : i32 to vector<4x128xi32>
    %4 = arith.addi %1, %3 : vector<4x128xi32>
    %5 = tpu.iota {dimensions = array<i32: 1>} : vector<4x128xi32>
    %c0_1 = arith.constant 0 : index
    %6 = memref.load %arg1[%c0_1] : memref<1xi32, #tpu.memory_space<smem>>
    %c-1640531535_i32 = arith.constant -1640531535 : i32
    %7 = vector.broadcast %c-1640531535_i32 : i32 to vector<4x128xi32>
    %8 = arith.muli %4, %7 : vector<4x128xi32>
    %c-2048144777_i32 = arith.constant -2048144777 : i32
    %9 = vector.broadcast %c-2048144777_i32 : i32 to vector<4x128xi32>
    %10 = arith.muli %5, %9 : vector<4x128xi32>
    %11 = arith.xori %8, %10 : vector<4x128xi32>
    %c-1028477379_i32 = arith.constant -1028477379 : i32
    %12 = arith.muli %6, %c-1028477379_i32 : i32
    %13 = vector.broadcast %12 : i32 to vector<4x128xi32>
    %14 = arith.addi %11, %13 : vector<4x128xi32>
    %c16_i32 = arith.constant 16 : i32
    %15 = vector.broadcast %c16_i32 : i32 to vector<4x128xi32>
    %16 = arith.shrui %14, %15 : vector<4x128xi32>
    %17 = arith.xori %14, %16 : vector<4x128xi32>
    %c2146121005_i32 = arith.constant 2146121005 : i32
    %18 = vector.broadcast %c2146121005_i32 : i32 to vector<4x128xi32>
    %19 = arith.muli %17, %18 : vector<4x128xi32>
    %c15_i32 = arith.constant 15 : i32
    %20 = vector.broadcast %c15_i32 : i32 to vector<4x128xi32>
    %21 = arith.shrui %19, %20 : vector<4x128xi32>
    %22 = arith.xori %19, %21 : vector<4x128xi32>
    %c-2073254261_i32 = arith.constant -2073254261 : i32
    %23 = vector.broadcast %c-2073254261_i32 : i32 to vector<4x128xi32>
    %24 = arith.muli %22, %23 : vector<4x128xi32>
    %c16_i32_2 = arith.constant 16 : i32
    %25 = vector.broadcast %c16_i32_2 : i32 to vector<4x128xi32>
    %26 = arith.shrui %24, %25 : vector<4x128xi32>
    %27 = arith.xori %24, %26 : vector<4x128xi32>
    %c0_3 = arith.constant 0 : index
    %c0_4 = arith.constant 0 : index
    %28 = vector.load %arg2[%c0_3, %c0_4] : memref<1x128xi32, #tpu.memory_space<vmem>>, vector<1x128xi32>
    %29 = vector.broadcast %28 : vector<1x128xi32> to vector<4x128xi32>
    %30 = arith.cmpi ult, %27, %29 : vector<4x128xi32>
    %cst = arith.constant 0.000000e+00 : f32
    %31 = vector.broadcast %cst : f32 to vector<4x128xf32>
    %cst_5 = arith.constant 1.11111116 : f32
    %32 = vector.broadcast %cst_5 : f32 to vector<4x128xf32>
    %33 = arith.mulf %0, %32 : vector<4x128xf32>
    %34 = arith.select %30, %31, %33 : vector<4x128xi1>, vector<4x128xf32>
    %c0_6 = arith.constant 0 : index
    %c0_7 = arith.constant 0 : index
    %35 = vector.load %arg4[%c0_6, %c0_7] : memref<4x128xf32, #tpu.memory_space<vmem>>, vector<4x128xf32>
    tpu.vector_store %arg4[%c0_6, %c0_7], %34 {strides = array<i32>} : memref<4x128xf32, #tpu.memory_space<vmem>>, vector<4x128xf32>,
    return
  }
  func.func @transform_0(%arg0: i32, %arg1: memref<1xi32, #tpu.memory_space<smem>>) -> (i32, i32) {
    %c0_i32 = arith.constant 0 : i32
    %c0_i32_0 = arith.constant 0 : i32
    %c0_i32_1 = arith.constant 0 : i32
    return %c0_i32, %c0_i32_0 : i32, i32
  }
  func.func @transform_1(%arg0: i32, %arg1: memref<1xi32, #tpu.memory_space<smem>>) -> (i32, i32) {
    %c0_i32 = arith.constant 0 : i32
    %c0_i32_0 = arith.constant 0 : i32
    return %arg0, %c0_i32 : i32, i32
  }
  func.func @transform_2(%arg0: i32, %arg1: memref<1xi32, #tpu.memory_space<smem>>) -> (i32, i32) {
    %c0_i32 = arith.constant 0 : i32
    %c0_i32_0 = arith.constant 0 : i32
    return %arg0, %c0_i32 : i32, i32
  }
}

</mosaic_0001>

<llo_original>
// kernel: tpu_custom_call.1
$region0: #{tpu_custom_call.1}
  #allocation0 [shape = 'u32[]', space=smem, size = 0x4, offset = 0x4, fixed_abs, tag = 'smem constant byte address 0x4 - core index']
  #allocation1 [shape = 'u32[144,128]{1,0:T(1,128)}', space=vmem, size = 0x12000, scoped, tag = 'internal scratch']
  #allocation2 [shape = 's32[1]{0}', space=sflag, size = 0x4, scoped, tag = 'scoped memory for tpu_custom_call.1']
  #allocation3 [shape = 's32[1]{0:T(128)S(6)}', space=smem, size = 0x200, scoped, tag = 'prefetched SMEM operand 0']
  %s0 = inlined_call_operand.<no memory space> [shape: s32[1], index: 0, kind: input, shape index: {}]
  %s1 = inlined_call_operand.vmem [shape: u32[1,128], index: 1, kind: input, shape index: {}]
  %s2 = inlined_call_operand.hbm [shape: f32[4,128], index: 2, kind: input, shape index: {}]
  %s3 = inlined_call_operand.hbm [shape: f32[4,128], index: 3, kind: output, shape index: {}]
  %s4 = sld [smem:[#allocation0]]
  $region22: #{tpu_custom_call.1} parent=0
    _
  %s6 = ssub.s32 1, %s4
  %s7 = scalar_select 0, %s6, %s4
  %8 = sst [smem:[#allocation3]] %s0
  $region1: #{tpu_custom_call.1} parent=0
    #allocation4 [shape = 'u8[2048]{0}', space=vmem, size = 0x800, scoped, tag = 'input window, operand 2, single buffered']
    #allocation5 [shape = 's32[1]{0}', space=sflag, size = 0x4, scoped, tag = 'scoped memory for tpu_custom_call.1']
    #allocation6 [shape = 's32[1]{0}', space=sflag, size = 0x4, scoped, tag = 'scoped memory for tpu_custom_call.1']
    #allocation7 [shape = 'u8[2048]{0}', space=vmem, size = 0x800, scoped, tag = 'output window, operand 0, single buffered']
    %9 = vsyncpa [#allocation5], 0
    %10 = vsyncpa [#allocation6], 0
    // Predicated region
    $region2: #{tpu_custom_call.1} parent=1 // pred_check
      _
    $region3: #{tpu_custom_call.1} parent=1 // pred_check_branch
      %12 = sbr.rel (0) target = $region5
    $region4: #{tpu_custom_call.1} parent=1 // pred_region
      _
    $region5: #{tpu_custom_call.1} parent=1 // pred_fallthru
      _
    // Predicated region
    $region6: #{tpu_custom_call.1} parent=1 // pred_check
      _
    $region7: #{tpu_custom_call.1} parent=1 // pred_check_branch
      %14 = sbr.rel (0) target = $region9
    $region8: #{tpu_custom_call.1} parent=1 // pred_region
      %s16 = ssub.s32 64, 64
      %17 = vsyncadd [#allocation5], %s16
      %s19 = sshll.u32 [#allocation4], 4
      %s20 = int_to_ptr.vmem [resolvable:$true] %s19
      %22 = dma.hbm_to_vmem [thread:$0]  %s2, 64, %s20, [#allocation5]
    $region9: #{tpu_custom_call.1} parent=1 // pred_fallthru
      _
    // Predicated region
    $region10: #{tpu_custom_call.1} parent=1 // pred_check
      _
    $region11: #{tpu_custom_call.1} parent=1 // pred_check_branch
      %24 = sbr.rel (0) target = $region13
    $region12: #{tpu_custom_call.1} parent=1 // pred_region
      %25 = dma.done [#allocation5], 64
    $region13: #{tpu_custom_call.1} parent=1 // pred_fallthru
      _
    %v26 = vld [vmem:[#allocation4] sm:$0xf]
    %v27 = vlaneseq
    %v28 = vshrl.u32 %v27, 7
    %s29 = smul.u32 0, 4
    %v30 = vstv %s29
    %v31 = vadd.s32 %v28, %v30
    %v32 = vlaneseq
    %v33 = vand.u32 %v32, 127
    %s34 = sld [smem:[#allocation3]]
    %v35 = vmul.u32 %v31, 2654435761
    %v36 = vmul.u32 %v33, 2246822519
    %v37 = vxor.u32 %v35, %v36
    %s38 = smul.u32 %s34, 3266489917
    %v39 = vstv %s38
    %v40 = vadd.s32 %v37, %v39
    %v41 = vshrl.u32 %v40, 16
    %v42 = vxor.u32 %v40, %v41
    %v43 = vmul.u32 %v42, 2146121005
    %v44 = vshrl.u32 %v43, 15
    %v45 = vxor.u32 %v43, %v44
    %v46 = vmul.u32 %v45, 2221713035
    %v47 = vshrl.u32 %v46, 16
    %v48 = vxor.u32 %v46, %v47
    %v49 = vld [vmem:[%s1] sm:$0x1]
    %v50 = vlaneseq
    %v51 = vshrl.u32 %v50, 7
    %v52 = vsub.s32 0, %v51
    %v53 = vrot.slane %v49, %v52
    %vm54 = vcmp.lt.u32.totalorder %v48, %v53
    %v55 = vmul.f32 %v26, 1.1111112
    %v56 = vsel %vm54, 0.0, %v55
    %57 = vst [vmem:[#allocation7] sm:$0xf] %v56
    // Predicated region
    $region14: #{tpu_custom_call.1} parent=1 // pred_check
      _
    $region15: #{tpu_custom_call.1} parent=1 // pred_check_branch
      %59 = sbr.rel (0) target = $region17
    $region16: #{tpu_custom_call.1} parent=1 // pred_region
      %s61 = ssub.s32 64, 64
      %62 = vsyncadd [#allocation6], %s61
      %s64 = sshll.u32 [#allocation7], 4
      %s65 = int_to_ptr.vmem [resolvable:$true] %s64
      %67 = dma.vmem_to_hbm [thread:$0]  %s65, 64, %s3, [#allocation6]
    $region17: #{tpu_custom_call.1} parent=1 // pred_fallthru
      _
    // Predicated region
    $region18: #{tpu_custom_call.1} parent=1 // pred_check
      _
    $region19: #{tpu_custom_call.1} parent=1 // pred_check_branch
      %69 = sbr.rel (0) target = $region21
    $region20: #{tpu_custom_call.1} parent=1 // pred_region
      %70 = dma.done [#allocation6], 64
    $region21: #{tpu_custom_call.1} parent=1 // pred_fallthru
      _
    %71 = vsyncpa [#allocation5], 1
    %72 = vsyncpa [#allocation6], 1

</llo_original>
